<compile_context>
chip_gen: v7x
topology: tpu7x:2x2x1
jax: 0.10.0
libtpu: 0.0.40
codegen_flags: <defaults>
</compile_context>

<pallas_src>
import math

import jax
import jax.numpy as jnp
from jax.experimental import pallas as pl
from jax.experimental.pallas import tpu as pltpu

HEAD_ROWS = 8  # packed head rows (row 0 = mu, row 1 = sigma, rest zero padding)


def _round_up(v, m):
    return ((v + m - 1) // m) * m


def actor_kernel(x_ref, w1_ref, b1_ref, w2_ref, b2_ref, whT_ref, bhT_ref, out_ref):
    # One batch tile; all weights resident in VMEM.
    x = x_ref[...]                                                    # [TB, In] bf16

    # fc1 + ReLU (f32 accumulate, f32 elementwise)
    h1 = jnp.dot(x, w1_ref[...], preferred_element_type=jnp.float32) + b1_ref[...]
    h1 = jnp.maximum(h1, 0.0)                                         # [TB, H] f32

    # fc2 + ReLU
    h2 = jnp.dot(h1.astype(jnp.bfloat16), w2_ref[...],
                 preferred_element_type=jnp.float32) + b2_ref[...]
    h2 = jnp.maximum(h2, 0.0)                                         # [TB, H] f32

    # Fused, transposed heads: heads_t[r, b] = sum_h whT[r, h] * h2[b, h]
    # (row 0 = mu pre-act, row 1 = sigma pre-act, rows 2..7 = zero padding).
    heads_t = jax.lax.dot_general(
        whT_ref[...], h2.astype(jnp.bfloat16),
        dimension_numbers=(((1,), (1,)), ((), ())),
        preferred_element_type=jnp.float32) + bhT_ref[...]            # [8, TB] f32

    row = jax.lax.broadcasted_iota(jnp.int32, heads_t.shape, 0)
    out_ref[...] = jnp.where(row == 0,
                             jnp.tanh(heads_t),                       # mu
                             jnp.logaddexp(heads_t, 0.0))             # softplus(sigma)


def actor_forward(x, packed_params, *, tile_b=1024):
    """x: [B, In] -> (mu [B,1], sigma [B,1]).  packed_params from pack_params()."""
    w1, b1, w2, b2, whT, bhT = packed_params
    in_dim, hidden = w1.shape
    B = x.shape[0]

    # Batch tile: multiple of 128 (lane-dense transposed output).  For mid/large
    # batches cap the tile so the grid has >= 2 steps (v7x megacore sharding).
    bp0 = _round_up(max(B, 1), 128)
    if bp0 >= 256:
        TB = min(tile_b, max(128, _round_up(bp0 // 2, 128)))
    else:
        TB = 128
    Bp = _round_up(B, TB)
    if Bp != B:
        x = jnp.pad(x, ((0, Bp - B), (0, 0)))
    x = x.astype(jnp.bfloat16)
    grid = (Bp // TB,)

    resident = lambda shape: pl.BlockSpec(shape, lambda i: (0, 0))  # stays in VMEM

    out = pl.pallas_call(
        actor_kernel,
        out_shape=jax.ShapeDtypeStruct((HEAD_ROWS, Bp), jnp.float32),
        grid=grid,
        in_specs=[
            pl.BlockSpec((TB, in_dim), lambda i: (i, 0)),   # x: tiled over batch
            resident(w1.shape), resident(b1.shape),
            resident(w2.shape), resident(b2.shape),
            resident(whT.shape), resident(bhT.shape),
        ],
        out_specs=pl.BlockSpec((HEAD_ROWS, TB), lambda i: (0, i)),
        compiler_params=pltpu.CompilerParams(
            dimension_semantics=("parallel",)),
    )(x, w1, b1, w2, b2, whT, bhT)

    mu = out[0:1, :B].T       # [B, 1]
    sigma = out[1:2, :B].T    # [B, 1]
    return mu, sigma


def pack_params(raw_params):
    """One-time pack: raw Actor params -> kernel-ready params.

    Heads are fused into a single transposed [HEAD_ROWS, hidden] slab and matmul
    operands are cast to bf16 (biases stay f32).  Done once at init, NOT per call.
    """
    w1, b1, w2, b2, wmu, bmu, wsig, bsig = raw_params
    hidden = w1.shape[1]
    whT = jnp.zeros((HEAD_ROWS, hidden), jnp.float32)
    whT = whT.at[0, :].set(wmu[:, 0]).at[1, :].set(wsig[:, 0])
    bhT = jnp.zeros((HEAD_ROWS, 1), jnp.float32)
    bhT = bhT.at[0, 0].set(bmu[0, 0]).at[1, 0].set(bsig[0, 0])
    return (w1.astype(jnp.bfloat16), b1.astype(jnp.float32),
            w2.astype(jnp.bfloat16), b2.astype(jnp.float32),
            whT.astype(jnp.bfloat16), bhT.astype(jnp.float32))


def init_params(key, input_dim, hidden):
    """Deterministic synthetic init (PyTorch-Linear-style uniform bounds)."""
    def linear(k, fan_in, fan_out):
        kw, kb = jax.random.split(k)
        bound = 1.0 / jnp.sqrt(jnp.float32(fan_in))
        w = jax.random.uniform(kw, (fan_in, fan_out), jnp.float32, -bound, bound)
        b = jax.random.uniform(kb, (1, fan_out), jnp.float32, -bound, bound)
        return w, b

    k1, k2, k3, k4 = jax.random.split(key, 4)
    w1, b1 = linear(k1, input_dim, hidden)
    w2, b2 = linear(k2, hidden, hidden)
    wmu, bmu = linear(k3, hidden, 1)
    wsig, bsig = linear(k4, hidden, 1)
    return (w1, b1, w2, b2, wmu, bmu, wsig, bsig)


if __name__ == "__main__":
    # SISO_Channel(K=10) -> state dimension 10 (one entry per user K).
    INPUT_DIM = 10
    HIDDEN = 128
    BATCH = 8

    key = jax.random.PRNGKey(0)
    kx, kp = jax.random.split(key)

    x = jax.random.normal(kx, (BATCH, INPUT_DIM), jnp.float32)
    raw = init_params(kp, INPUT_DIM, HIDDEN)
    params = pack_params(raw)   # one-time packing, outside the hot path

    mu, sigma = actor_forward(x, params)
    jax.block_until_ready((mu, sigma))

    # Pure-JAX f32 reference check (kernel matmuls run in bf16 -> relaxed tol).
    w1, b1, w2, b2, wmu, bmu, wsig, bsig = raw
    h1 = jax.nn.relu(x @ w1 + b1)
    h2 = jax.nn.relu(h1 @ w2 + b2)
    mu_ref = jnp.tanh(h2 @ wmu + bmu)
    sigma_ref = jax.nn.softplus(h2 @ wsig + bsig)
    assert mu.shape == (BATCH, 1) and sigma.shape == (BATCH, 1)
    assert jnp.allclose(mu, mu_ref, atol=5e-2, rtol=5e-2), "mu mismatch"
    assert jnp.allclose(sigma, sigma_ref, atol=5e-2, rtol=5e-2), "sigma mismatch"

    print("KERNEL_OK")
</pallas_src>

<mosaic_0001>
module attributes {stable_mosaic.version = 11 : i64} {
  func.func @actor_kernel(%arg0: i32, %arg1: memref<128x10xbf16, #tpu.memory_space<vmem>>, %arg2: memref<10x128xbf16, #tpu.memory_space<vmem>>, %arg3: memref<1x128xf32, #tpu.memory_space<vmem>>, %arg4: memref<128x128xbf16, #tpu.memory_space<vmem>>, %arg5: memref<1x128xf32, #tpu.memory_space<vmem>>, %arg6: memref<8x128xbf16, #tpu.memory_space<vmem>>, %arg7: memref<8x1xf32, #tpu.memory_space<vmem>>, %arg8: memref<8x128xf32, #tpu.memory_space<vmem>>) attributes {dimension_semantics = [#tpu.dimension_semantics<parallel>], iteration_bounds = array<i64: 1>, scalar_prefetch = 0 : i64, scratch_operands = 0 : i64, tpu.core_type = #tpu.core_type<tc>, window_params = [{transform_indices = @transform_0, window_bounds = array<i64: 128, 10>}, {pipeline_mode = #tpu.pipeline_mode<synchronous>, transform_indices = @transform_1, window_bounds = array<i64: 10, 128>}, {pipeline_mode = #tpu.pipeline_mode<synchronous>, transform_indices = @transform_2, window_bounds = array<i64: 1, 128>}, {pipeline_mode = #tpu.pipeline_mode<synchronous>, transform_indices = @transform_3, window_bounds = array<i64: 128, 128>}, {pipeline_mode = #tpu.pipeline_mode<synchronous>, transform_indices = @transform_4, window_bounds = array<i64: 1, 128>}, {pipeline_mode = #tpu.pipeline_mode<synchronous>, transform_indices = @transform_5, window_bounds = array<i64: 8, 128>}, {pipeline_mode = #tpu.pipeline_mode<synchronous>, transform_indices = @transform_6, window_bounds = array<i64: 8, 1>}, {transform_indices = @transform_7, window_bounds = array<i64: 8, 128>}]} {
    %c0 = arith.constant 0 : index
    %c0_0 = arith.constant 0 : index
    %0 = vector.load %arg1[%c0, %c0_0] : memref<128x10xbf16, #tpu.memory_space<vmem>>, vector<128x10xbf16>
    %c0_1 = arith.constant 0 : index
    %c0_2 = arith.constant 0 : index
    %1 = vector.load %arg2[%c0_1, %c0_2] : memref<10x128xbf16, #tpu.memory_space<vmem>>, vector<10x128xbf16>
    %cst = arith.constant dense<0.000000e+00> : vector<128x128xf32>
    %2 = tpu.matmul %0, %1, %cst {dimension_numbers = #tpu.dot_dimension_numbers<[1], [0], [0], [1], [0, 0, 1, 1], [], []>} : vector<128x10xbf16>, vector<10x128xbf16>, vector<128x128xf32> -> vector<128x128xf32>
    %c0_3 = arith.constant 0 : index
    %c0_4 = arith.constant 0 : index
    %3 = vector.load %arg3[%c0_3, %c0_4] : memref<1x128xf32, #tpu.memory_space<vmem>>, vector<1x128xf32>
    %4 = vector.broadcast %3 : vector<1x128xf32> to vector<128x128xf32>
    %5 = arith.addf %2, %4 : vector<128x128xf32>
    %cst_5 = arith.constant 0.000000e+00 : f32
    %6 = vector.broadcast %cst_5 : f32 to vector<128x128xf32>
    %7 = arith.maximumf %5, %6 : vector<128x128xf32>
    %8 = arith.truncf %7 : vector<128x128xf32> to vector<128x128xbf16>
    %c0_6 = arith.constant 0 : index
    %c0_7 = arith.constant 0 : index
    %9 = vector.load %arg4[%c0_6, %c0_7] : memref<128x128xbf16, #tpu.memory_space<vmem>>, vector<128x128xbf16>
    %cst_8 = arith.constant dense<0.000000e+00> : vector<128x128xf32>
    %10 = tpu.matmul %8, %9, %cst_8 {dimension_numbers = #tpu.dot_dimension_numbers<[1], [0], [0], [1], [0, 0, 1, 1], [], []>} : vector<128x128xbf16>, vector<128x128xbf16>, vector<128x128xf32> -> vector<128x128xf32>
    %c0_9 = arith.constant 0 : index
    %c0_10 = arith.constant 0 : index
    %11 = vector.load %arg5[%c0_9, %c0_10] : memref<1x128xf32, #tpu.memory_space<vmem>>, vector<1x128xf32>
    %12 = vector.broadcast %11 : vector<1x128xf32> to vector<128x128xf32>
    %13 = arith.addf %10, %12 : vector<128x128xf32>
    %cst_11 = arith.constant 0.000000e+00 : f32
    %14 = vector.broadcast %cst_11 : f32 to vector<128x128xf32>
    %15 = arith.maximumf %13, %14 : vector<128x128xf32>
    %c0_12 = arith.constant 0 : index
    %c0_13 = arith.constant 0 : index
    %16 = vector.load %arg6[%c0_12, %c0_13] : memref<8x128xbf16, #tpu.memory_space<vmem>>, vector<8x128xbf16>
    %17 = arith.truncf %15 : vector<128x128xf32> to vector<128x128xbf16>
    %cst_14 = arith.constant dense<0.000000e+00> : vector<8x128xf32>
    %18 = tpu.matmul %16, %17, %cst_14 {dimension_numbers = #tpu.dot_dimension_numbers<[1], [1], [0], [0], [0, 0, 1, 0], [], []>} : vector<8x128xbf16>, vector<128x128xbf16>, vector<8x128xf32> -> vector<8x128xf32>
    %c0_15 = arith.constant 0 : index
    %c0_16 = arith.constant 0 : index
    %19 = vector.load %arg7[%c0_15, %c0_16] : memref<8x1xf32, #tpu.memory_space<vmem>>, vector<8x1xf32>
    %20 = vector.broadcast %19 : vector<8x1xf32> to vector<8x128xf32>
    %21 = arith.addf %18, %20 : vector<8x128xf32>
    %22 = tpu.iota {dimensions = array<i32: 0>} : vector<8x128xi32>
    %c0_i32 = arith.constant 0 : i32
    %23 = vector.broadcast %c0_i32 : i32 to vector<8x128xi32>
    %24 = arith.cmpi eq, %22, %23 : vector<8x128xi32>
    %25 = math.tanh %21 : vector<8x128xf32>
    %cst_17 = arith.constant 0.000000e+00 : f32
    %26 = vector.broadcast %cst_17 : f32 to vector<8x128xf32>
    %27 = arith.maximumf %21, %26 : vector<8x128xf32>
    %28 = vector.broadcast %cst_17 : f32 to vector<8x128xf32>
    %29 = arith.subf %21, %28 : vector<8x128xf32>
    %30 = arith.cmpf one, %29, %29 : vector<8x128xf32>
    %31 = vector.broadcast %cst_17 : f32 to vector<8x128xf32>
    %32 = arith.addf %21, %31 : vector<8x128xf32>
    %33 = math.absf %29 : vector<8x128xf32>
    %cst_18 = arith.constant 0.000000e+00 : f32
    %34 = vector.broadcast %cst_18 : f32 to vector<8x128xf32>
    %35 = arith.subf %34, %33 : vector<8x128xf32>
    %36 = math.exp %35 : vector<8x128xf32>
    %37 = math.log1p %36 : vector<8x128xf32>
    %38 = arith.addf %27, %37 : vector<8x128xf32>
    %39 = arith.select %30, %32, %38 : vector<8x128xi1>, vector<8x128xf32>
    %40 = arith.select %24, %25, %39 : vector<8x128xi1>, vector<8x128xf32>
    %c0_19 = arith.constant 0 : index
    %c0_20 = arith.constant 0 : index
    %41 = vector.load %arg8[%c0_19, %c0_20] : memref<8x128xf32, #tpu.memory_space<vmem>>, vector<8x128xf32>
    tpu.vector_store %arg8[%c0_19, %c0_20], %40 {strides = array<i32>} : memref<8x128xf32, #tpu.memory_space<vmem>>, vector<8x128xf32>,
    return
  }
  func.func @transform_0(%arg0: i32) -> (i32, i32) {
    %c0_i32 = arith.constant 0 : i32
    %c0_i32_0 = arith.constant 0 : i32
    return %arg0, %c0_i32 : i32, i32
  }
  func.func @transform_1(%arg0: i32) -> (i32, i32) {
    %c0_i32 = arith.constant 0 : i32
    %c0_i32_0 = arith.constant 0 : i32
    %c0_i32_1 = arith.constant 0 : i32
    return %c0_i32, %c0_i32_0 : i32, i32
  }
  func.func @transform_2(%arg0: i32) -> (i32, i32) {
    %c0_i32 = arith.constant 0 : i32
    %c0_i32_0 = arith.constant 0 : i32
    %c0_i32_1 = arith.constant 0 : i32
    return %c0_i32, %c0_i32_0 : i32, i32
  }
  func.func @transform_3(%arg0: i32) -> (i32, i32) {
    %c0_i32 = arith.constant 0 : i32
    %c0_i32_0 = arith.constant 0 : i32
    %c0_i32_1 = arith.constant 0 : i32
    return %c0_i32, %c0_i32_0 : i32, i32
  }
  func.func @transform_4(%arg0: i32) -> (i32, i32) {
    %c0_i32 = arith.constant 0 : i32
    %c0_i32_0 = arith.constant 0 : i32
    %c0_i32_1 = arith.constant 0 : i32
    return %c0_i32, %c0_i32_0 : i32, i32
  }
  func.func @transform_5(%arg0: i32) -> (i32, i32) {
    %c0_i32 = arith.constant 0 : i32
    %c0_i32_0 = arith.constant 0 : i32
    %c0_i32_1 = arith.constant 0 : i32
    return %c0_i32, %c0_i32_0 : i32, i32
  }
  func.func @transform_6(%arg0: i32) -> (i32, i32) {
    %c0_i32 = arith.constant 0 : i32
    %c0_i32_0 = arith.constant 0 : i32
    %c0_i32_1 = arith.constant 0 : i32
    return %c0_i32, %c0_i32_0 : i32, i32
  }
  func.func @transform_7(%arg0: i32) -> (i32, i32) {
    %c0_i32 = arith.constant 0 : i32
    %c0_i32_0 = arith.constant 0 : i32
    return %c0_i32, %arg0 : i32, i32
  }
}

</mosaic_0001>

<llo_original>
// kernel: tpu_custom_call.1
$region0: #{tpu_custom_call.1}
  #allocation0 [shape = 'u32[]', space=smem, size = 0x4, offset = 0x4, fixed_abs, tag = 'smem constant byte address 0x4 - core index']
  #allocation1 [shape = 'u32[144,128]{1,0:T(1,128)}', space=vmem, size = 0x12000, scoped, tag = 'internal scratch']
  %s0 = inlined_call_operand.vmem [shape: bf16[128,10], index: 0, kind: input, shape index: {}]
  %s1 = inlined_call_operand.vmem [shape: bf16[10,128], index: 1, kind: input, shape index: {}]
  %s2 = inlined_call_operand.vmem [shape: f32[1,128], index: 2, kind: input, shape index: {}]
  %s3 = inlined_call_operand.vmem [shape: bf16[128,128], index: 3, kind: input, shape index: {}]
  %s4 = inlined_call_operand.vmem [shape: f32[1,128], index: 4, kind: input, shape index: {}]
  %s5 = inlined_call_operand.vmem [shape: bf16[8,128], index: 5, kind: input, shape index: {}]
  %s6 = inlined_call_operand.vmem [shape: f32[8,1], index: 6, kind: input, shape index: {}]
  %s7 = inlined_call_operand.hbm [shape: f32[8,128], index: 7, kind: output, shape index: {}]
  %s8 = sld [smem:[#allocation0]]
  $region38: #{tpu_custom_call.1} parent=0
    _
  %s10 = ssub.s32 1, %s8
  %s11 = scalar_select 0, %s10, %s8
  $region1: #{tpu_custom_call.1} parent=0
    #allocation2 [shape = 'u8[4096]{0}', space=vmem, size = 0x1000, scoped, tag = 'output window, operand 0, single buffered']
    #allocation3 [shape = 's32[1]{0}', space=sflag, size = 0x4, scoped, tag = 'scoped memory for tpu_custom_call.1']
    %12 = vsyncpa [#allocation3], 0
    // Predicated region
    $region2: #{tpu_custom_call.1} parent=1 // pred_check
      _
    $region3: #{tpu_custom_call.1} parent=1 // pred_check_branch
      %14 = sbr.rel (0) target = $region5
    $region4: #{tpu_custom_call.1} parent=1 // pred_region
      _
    $region5: #{tpu_custom_call.1} parent=1 // pred_fallthru
      _
    // Predicated region
    $region6: #{tpu_custom_call.1} parent=1 // pred_check
      _
    $region7: #{tpu_custom_call.1} parent=1 // pred_check_branch
      %16 = sbr.rel (0) target = $region9
    $region8: #{tpu_custom_call.1} parent=1 // pred_region
      _
    $region9: #{tpu_custom_call.1} parent=1 // pred_fallthru
      _
    // Predicated region
    $region10: #{tpu_custom_call.1} parent=1 // pred_check
      _
    $region11: #{tpu_custom_call.1} parent=1 // pred_check_branch
      %18 = sbr.rel (0) target = $region13
    $region12: #{tpu_custom_call.1} parent=1 // pred_region
      _
    $region13: #{tpu_custom_call.1} parent=1 // pred_fallthru
      _
    // Predicated region
    $region14: #{tpu_custom_call.1} parent=1 // pred_check
      _
    $region15: #{tpu_custom_call.1} parent=1 // pred_check_branch
      %20 = sbr.rel (0) target = $region17
    $region16: #{tpu_custom_call.1} parent=1 // pred_region
      _
    $region17: #{tpu_custom_call.1} parent=1 // pred_fallthru
      _
    // Predicated region
    $region18: #{tpu_custom_call.1} parent=1 // pred_check
      _
    $region19: #{tpu_custom_call.1} parent=1 // pred_check_branch
      %22 = sbr.rel (0) target = $region21
    $region20: #{tpu_custom_call.1} parent=1 // pred_region
      _
    $region21: #{tpu_custom_call.1} parent=1 // pred_fallthru
      _
    // Predicated region
    $region22: #{tpu_custom_call.1} parent=1 // pred_check
      _
    $region23: #{tpu_custom_call.1} parent=1 // pred_check_branch
      %24 = sbr.rel (0) target = $region25
    $region24: #{tpu_custom_call.1} parent=1 // pred_region
      _
    $region25: #{tpu_custom_call.1} parent=1 // pred_fallthru
      _
    // Predicated region
    $region26: #{tpu_custom_call.1} parent=1 // pred_check
      _
    $region27: #{tpu_custom_call.1} parent=1 // pred_check_branch
      %26 = sbr.rel (0) target = $region29
    $region28: #{tpu_custom_call.1} parent=1 // pred_region
      _
    $region29: #{tpu_custom_call.1} parent=1 // pred_fallthru
      _
    %v28 = vld [vmem:[%s0] sm:$0xf]
    %v29 = vld [vmem:[%s0 + $0x4] sm:$0xf]
    %v30 = vld [vmem:[%s0 + $0x8] sm:$0xf]
    %v31 = vld [vmem:[%s0 + $0xc] sm:$0xf]
    %v32 = vld [vmem:[%s0 + $0x10] sm:$0xf]
    %v33 = vld [vmem:[%s0 + $0x14] sm:$0xf]
    %v34 = vld [vmem:[%s0 + $0x18] sm:$0xf]
    %v35 = vld [vmem:[%s0 + $0x1c] sm:$0xf]
    %v36 = vld [vmem:[%s0 + $0x20] sm:$0xf]
    %v37 = vld [vmem:[%s0 + $0x24] sm:$0xf]
    %v38 = vld [vmem:[%s0 + $0x28] sm:$0xf]
    %v39 = vld [vmem:[%s0 + $0x2c] sm:$0xf]
    %v40 = vld [vmem:[%s0 + $0x30] sm:$0xf]
    %v41 = vld [vmem:[%s0 + $0x34] sm:$0xf]
    %v42 = vld [vmem:[%s0 + $0x38] sm:$0xf]
    %v43 = vld [vmem:[%s0 + $0x3c] sm:$0xf]
    %v44 = vld [vmem:[%s1] sm:$0xf]
    %v45 = vld [vmem:[%s1 + $0x4] sm:$0x1]
    %v46 = vld [vmem:[%s2] sm:$0x1]
    %v48 = vlaneseq
    %v49 = vshrl.u32 %v48, 7
    %v50 = vsub.s32 0, %v49
    %v51 = vrot.slane %v46, %v50
    %v69 = vunpack.c.l.b16 %v28
    %v70 = vunpack.c.l.b16 %v29
    %v71 = vunpack.c.l.b16 %v30
    %v72 = vunpack.c.l.b16 %v31
    %v73 = vunpack.c.l.b16 %v32
    %v74 = vunpack.c.l.b16 %v33
    %v75 = vunpack.c.l.b16 %v34
    %v76 = vunpack.c.l.b16 %v35
    %v77 = vunpack.c.l.b16 %v36
    %v78 = vunpack.c.l.b16 %v37
    %v79 = vunpack.c.l.b16 %v38
    %v80 = vunpack.c.l.b16 %v39
    %v81 = vunpack.c.l.b16 %v40
    %v82 = vunpack.c.l.b16 %v41
    %v83 = vunpack.c.l.b16 %v42
    %v84 = vunpack.c.l.b16 %v43
    %v85 = vpack.c.b16 %v70, %v69
    %v86 = vpack.c.b16 %v72, %v71
    %v87 = vpack.c.b16 %v74, %v73
    %v88 = vpack.c.b16 %v76, %v75
    %v89 = vpack.c.b16 %v78, %v77
    %v90 = vpack.c.b16 %v80, %v79
    %v91 = vpack.c.b16 %v82, %v81
    %v92 = vpack.c.b16 %v84, %v83
    %v95 = vunpack.c.l.b16 %v44
    %v96 = vunpack.c.l.b16 %v45
    %v97 = vpack.c.b16 %v96, %v95
    %vm98 = vcmask 80896
    %v100 = vsel %vm98, %v85, 0
    %v103 = vsel %vm98, %v86, 0
    %v106 = vsel %vm98, %v87, 0
    %v109 = vsel %vm98, %v88, 0
    %v112 = vsel %vm98, %v89, 0
    %v115 = vsel %vm98, %v90, 0
    %v118 = vsel %vm98, %v91, 0
    %v121 = vsel %vm98, %v92, 0
    %vm123 = vcmask 1044480
    %v125 = vsel %vm123, %v97, 0
    %127 = vmatprep.subr.bf16.mxu0 0
    %128 = vmatpush1.bf16.msra.mxu0 %v125
    %129 = vmatprep.subr.bf16.mxu0 0
    %130 = vmatpush1.bf16.msra.mxu0 0
    %131 = vmatprep.subr.bf16.mxu0 0
    %132 = vmatpush1.bf16.msra.mxu0 0
    %133 = vmatprep.subr.bf16.mxu0 0
    %134 = vmatpush1.bf16.msra.mxu0 0
    %135 = vmatprep.subr.bf16.mxu0 0
    %136 = vmatpush1.bf16.msra.mxu0 0
    %137 = vmatprep.subr.bf16.mxu0 0
    %138 = vmatpush1.bf16.msra.mxu0 0
    %139 = vmatprep.subr.bf16.mxu0 0
    %140 = vmatpush1.bf16.msra.mxu0 0
    %141 = vmatprep.subr.bf16.mxu0 0
    %142 = vmatpush1.bf16.msra.mxu0 0
    %143 = vmatprep.subr.bf16.mxu0 0
    %144 = vmatpush1.bf16.msra.mxu0 0
    %145 = vmatprep.subr.bf16.mxu0 0
    %146 = vmatpush1.bf16.msra.mxu0 0
    %147 = vmatprep.subr.bf16.mxu0 0
    %148 = vmatpush1.bf16.msra.mxu0 0
    %149 = vmatprep.subr.bf16.mxu0 0
    %150 = vmatpush1.bf16.msra.mxu0 0
    %151 = vmatprep.subr.bf16.mxu0 0
    %152 = vmatpush1.bf16.msra.mxu0 0
    %153 = vmatprep.subr.bf16.mxu0 0
    %154 = vmatpush1.bf16.msra.mxu0 0
    %155 = vmatprep.subr.bf16.mxu0 0
    %156 = vmatpush1.bf16.msra.mxu0 0
    %157 = vmatprep.subr.bf16.mxu0 0
    %158 = vmatpush1.bf16.msra.mxu0 0
    %159 = vmatprep.mubr.bf16.mxu0 0
    %160 = vmatmul.mubr.bf16.gmra.mrb[0].mxu0 %v100
    %v161 = vpop.f32.mrb[0].mxu0
    %v162 = vadd.f32 %v51, %v161
    %v163 = vpop.f32.mrb[0].mxu0
    %v164 = vpop.f32.mrb[0].mxu0
    %v165 = vadd.f32 %v51, %v164
    %v166 = vpop.f32.mrb[0].mxu0
    %167 = vmatprep.mubr.bf16.mxu0 0
    %168 = vmatmul.mubr.bf16.gmra.mrb[0].mxu0 %v103
    %v169 = vpop.f32.mrb[0].mxu0
    %v170 = vadd.f32 %v51, %v169
    %v171 = vpop.f32.mrb[0].mxu0
    %v172 = vpop.f32.mrb[0].mxu0
    %v173 = vadd.f32 %v51, %v172
    %v174 = vpop.f32.mrb[0].mxu0
    %175 = vmatprep.mubr.bf16.mxu0 0
    %176 = vmatmul.mubr.bf16.gmra.mrb[0].mxu0 %v106
    %v177 = vpop.f32.mrb[0].mxu0
    %v178 = vadd.f32 %v51, %v177
    %v179 = vpop.f32.mrb[0].mxu0
    %v180 = vpop.f32.mrb[0].mxu0
    %v181 = vadd.f32 %v51, %v180
    %v182 = vpop.f32.mrb[0].mxu0
    %183 = vmatprep.mubr.bf16.mxu0 0
    %184 = vmatmul.mubr.bf16.gmra.mrb[0].mxu0 %v109
    %v185 = vpop.f32.mrb[0].mxu0
    %v186 = vadd.f32 %v51, %v185
    %v187 = vpop.f32.mrb[0].mxu0
    %v188 = vpop.f32.mrb[0].mxu0
    %v189 = vadd.f32 %v51, %v188
    %v190 = vpop.f32.mrb[0].mxu0
    %191 = vmatprep.mubr.bf16.mxu0 0
    %192 = vmatmul.mubr.bf16.gmra.mrb[0].mxu0 %v112
    %v193 = vpop.f32.mrb[0].mxu0
    %v194 = vadd.f32 %v51, %v193
    %v195 = vpop.f32.mrb[0].mxu0
    %v196 = vpop.f32.mrb[0].mxu0
    %v197 = vadd.f32 %v51, %v196
    %v198 = vpop.f32.mrb[0].mxu0
    %199 = vmatprep.mubr.bf16.mxu0 0
    %200 = vmatmul.mubr.bf16.gmra.mrb[0].mxu0 %v115
    %v201 = vpop.f32.mrb[0].mxu0
    %v202 = vadd.f32 %v51, %v201
    %v203 = vpop.f32.mrb[0].mxu0
    %v204 = vpop.f32.mrb[0].mxu0
    %v205 = vadd.f32 %v51, %v204
    %v206 = vpop.f32.mrb[0].mxu0
    %207 = vmatprep.mubr.bf16.mxu0 0
    %208 = vmatmul.mubr.bf16.gmra.mrb[0].mxu0 %v118
    %v209 = vpop.f32.mrb[0].mxu0
    %v210 = vadd.f32 %v51, %v209
    %v211 = vpop.f32.mrb[0].mxu0
    %v212 = vpop.f32.mrb[0].mxu0
    %v213 = vadd.f32 %v51, %v212
    %v214 = vpop.f32.mrb[0].mxu0
    %215 = vmatprep.mubr.bf16.mxu0 0
    %216 = vmatmul.mubr.bf16.gmra.mrb[0].mxu0 %v121
    %v217 = vpop.f32.mrb[0].mxu0
    %v218 = vadd.f32 %v51, %v217
    %v219 = vpop.f32.mrb[0].mxu0
    %v220 = vpop.f32.mrb[0].mxu0
    %v221 = vadd.f32 %v51, %v220
    %v222 = vpop.f32.mrb[0].mxu0
    %223 = vdwg.mxu0
    %v224 = vmax.f32 %v162, 0.0
    %v225 = vmax.f32 %v165, 0.0
    %v226 = vmax.f32 %v170, 0.0
    %v227 = vmax.f32 %v173, 0.0
    %v228 = vmax.f32 %v178, 0.0
    %v229 = vmax.f32 %v181, 0.0
    %v230 = vmax.f32 %v186, 0.0
    %v231 = vmax.f32 %v189, 0.0
    %v232 = vmax.f32 %v194, 0.0
    %v233 = vmax.f32 %v197, 0.0
    %v234 = vmax.f32 %v202, 0.0
    %v235 = vmax.f32 %v205, 0.0
    %v236 = vmax.f32 %v210, 0.0
    %v237 = vmax.f32 %v213, 0.0
    %v238 = vmax.f32 %v218, 0.0
    %v239 = vmax.f32 %v221, 0.0
    %v240 = vpack.c.bf16 %v225, %v224
    %v241 = vpack.c.bf16 %v227, %v226
    %v242 = vpack.c.bf16 %v229, %v228
    %v243 = vpack.c.bf16 %v231, %v230
    %v244 = vpack.c.bf16 %v233, %v232
    %v245 = vpack.c.bf16 %v235, %v234
    %v246 = vpack.c.bf16 %v237, %v236
    %v247 = vpack.c.bf16 %v239, %v238
    %v248 = vld [vmem:[%s3] sm:$0xf]
    %v249 = vld [vmem:[%s3 + $0x4] sm:$0xf]
    %v250 = vld [vmem:[%s3 + $0x8] sm:$0xf]
    %v251 = vld [vmem:[%s3 + $0xc] sm:$0xf]
    %v252 = vld [vmem:[%s3 + $0x10] sm:$0xf]
    %v253 = vld [vmem:[%s3 + $0x14] sm:$0xf]
    %v254 = vld [vmem:[%s3 + $0x18] sm:$0xf]
    %v255 = vld [vmem:[%s3 + $0x1c] sm:$0xf]
    %v256 = vld [vmem:[%s3 + $0x20] sm:$0xf]
    %v257 = vld [vmem:[%s3 + $0x24] sm:$0xf]
    %v258 = vld [vmem:[%s3 + $0x28] sm:$0xf]
    %v259 = vld [vmem:[%s3 + $0x2c] sm:$0xf]
    %v260 = vld [vmem:[%s3 + $0x30] sm:$0xf]
    %v261 = vld [vmem:[%s3 + $0x34] sm:$0xf]
    %v262 = vld [vmem:[%s3 + $0x38] sm:$0xf]
    %v263 = vld [vmem:[%s3 + $0x3c] sm:$0xf]
    %v264 = vld [vmem:[%s4] sm:$0x1]
    %v266 = vlaneseq
    %v267 = vshrl.u32 %v266, 7
    %v268 = vsub.s32 0, %v267
    %v269 = vrot.slane %v264, %v268
    %v287 = vunpack.c.l.b16 %v248
    %v288 = vunpack.c.l.b16 %v249
    %v289 = vunpack.c.l.b16 %v250
    %v290 = vunpack.c.l.b16 %v251
    %v291 = vunpack.c.l.b16 %v252
    %v292 = vunpack.c.l.b16 %v253
    %v293 = vunpack.c.l.b16 %v254
    %v294 = vunpack.c.l.b16 %v255
    %v295 = vunpack.c.l.b16 %v256
    %v296 = vunpack.c.l.b16 %v257
    %v297 = vunpack.c.l.b16 %v258
    %v298 = vunpack.c.l.b16 %v259
    %v299 = vunpack.c.l.b16 %v260
    %v300 = vunpack.c.l.b16 %v261
    %v301 = vunpack.c.l.b16 %v262
    %v302 = vunpack.c.l.b16 %v263
    %v303 = vpack.c.b16 %v288, %v287
    %v304 = vpack.c.b16 %v290, %v289
    %v305 = vpack.c.b16 %v292, %v291
    %v306 = vpack.c.b16 %v294, %v293
    %v307 = vpack.c.b16 %v296, %v295
    %v308 = vpack.c.b16 %v298, %v297
    %v309 = vpack.c.b16 %v300, %v299
    %v310 = vpack.c.b16 %v302, %v301
    %319 = vmatprep.subr.bf16.mxu0 0
    %320 = vmatpush1.bf16.msra.mxu0 %v303
    %321 = vmatprep.subr.bf16.mxu0 0
    %322 = vmatpush1.bf16.msra.mxu0 %v304
    %323 = vmatprep.subr.bf16.mxu0 0
    %324 = vmatpush1.bf16.msra.mxu0 %v305
    %325 = vmatprep.subr.bf16.mxu0 0
    %326 = vmatpush1.bf16.msra.mxu0 %v306
    %327 = vmatprep.subr.bf16.mxu0 0
    %328 = vmatpush1.bf16.msra.mxu0 %v307
    %329 = vmatprep.subr.bf16.mxu0 0
    %330 = vmatpush1.bf16.msra.mxu0 %v308
    %331 = vmatprep.subr.bf16.mxu0 0
    %332 = vmatpush1.bf16.msra.mxu0 %v309
    %333 = vmatprep.subr.bf16.mxu0 0
    %334 = vmatpush1.bf16.msra.mxu0 %v310
    %335 = vmatprep.subr.bf16.mxu0 0
    %336 = vmatpush1.bf16.msra.mxu0 0
    %337 = vmatprep.subr.bf16.mxu0 0
    %338 = vmatpush1.bf16.msra.mxu0 0
    %339 = vmatprep.subr.bf16.mxu0 0
    %340 = vmatpush1.bf16.msra.mxu0 0
    %341 = vmatprep.subr.bf16.mxu0 0
    %342 = vmatpush1.bf16.msra.mxu0 0
    %343 = vmatprep.subr.bf16.mxu0 0
    %344 = vmatpush1.bf16.msra.mxu0 0
    %345 = vmatprep.subr.bf16.mxu0 0
    %346 = vmatpush1.bf16.msra.mxu0 0
    %347 = vmatprep.subr.bf16.mxu0 0
    %348 = vmatpush1.bf16.msra.mxu0 0
    %349 = vmatprep.subr.bf16.mxu0 0
    %350 = vmatpush1.bf16.msra.mxu0 0
    %351 = vmatprep.mubr.bf16.mxu0 0
    %352 = vmatmul.mubr.bf16.gmra.mrb[0].mxu0 %v240
    %v353 = vpop.f32.mrb[0].mxu0
    %v354 = vadd.f32 %v269, %v353
    %v355 = vpop.f32.mrb[0].mxu0
    %v356 = vpop.f32.mrb[0].mxu0
    %v357 = vadd.f32 %v269, %v356
    %v358 = vpop.f32.mrb[0].mxu0
    %359 = vmatprep.mubr.bf16.mxu0 0
    %360 = vmatmul.mubr.bf16.gmra.mrb[0].mxu0 %v241
    %v361 = vpop.f32.mrb[0].mxu0
    %v362 = vadd.f32 %v269, %v361
    %v363 = vpop.f32.mrb[0].mxu0
    %v364 = vpop.f32.mrb[0].mxu0
    %v365 = vadd.f32 %v269, %v364
    %v366 = vpop.f32.mrb[0].mxu0
    %367 = vmatprep.mubr.bf16.mxu0 0
    %368 = vmatmul.mubr.bf16.gmra.mrb[0].mxu0 %v242
    %v369 = vpop.f32.mrb[0].mxu0
    %v370 = vadd.f32 %v269, %v369
    %v371 = vpop.f32.mrb[0].mxu0
    %v372 = vpop.f32.mrb[0].mxu0
    %v373 = vadd.f32 %v269, %v372
    %v374 = vpop.f32.mrb[0].mxu0
    %375 = vmatprep.mubr.bf16.mxu0 0
    %376 = vmatmul.mubr.bf16.gmra.mrb[0].mxu0 %v243
    %v377 = vpop.f32.mrb[0].mxu0
    %v378 = vadd.f32 %v269, %v377
    %v379 = vpop.f32.mrb[0].mxu0
    %v380 = vpop.f32.mrb[0].mxu0
    %v381 = vadd.f32 %v269, %v380
    %v382 = vpop.f32.mrb[0].mxu0
    %383 = vmatprep.mubr.bf16.mxu0 0
    %384 = vmatmul.mubr.bf16.gmra.mrb[0].mxu0 %v244
    %v385 = vpop.f32.mrb[0].mxu0
    %v386 = vadd.f32 %v269, %v385
    %v387 = vpop.f32.mrb[0].mxu0
    %v388 = vpop.f32.mrb[0].mxu0
    %v389 = vadd.f32 %v269, %v388
    %v390 = vpop.f32.mrb[0].mxu0
    %391 = vmatprep.mubr.bf16.mxu0 0
    %392 = vmatmul.mubr.bf16.gmra.mrb[0].mxu0 %v245
    %v393 = vpop.f32.mrb[0].mxu0
    %v394 = vadd.f32 %v269, %v393
    %v395 = vpop.f32.mrb[0].mxu0
    %v396 = vpop.f32.mrb[0].mxu0
    %v397 = vadd.f32 %v269, %v396
    %v398 = vpop.f32.mrb[0].mxu0
    %399 = vmatprep.mubr.bf16.mxu0 0
    %400 = vmatmul.mubr.bf16.gmra.mrb[0].mxu0 %v246
    %v401 = vpop.f32.mrb[0].mxu0
    %v402 = vadd.f32 %v269, %v401
    %v403 = vpop.f32.mrb[0].mxu0
    %v404 = vpop.f32.mrb[0].mxu0
    %v405 = vadd.f32 %v269, %v404
    %v406 = vpop.f32.mrb[0].mxu0
    %407 = vmatprep.mubr.bf16.mxu0 0
    %408 = vmatmul.mubr.bf16.gmra.mrb[0].mxu0 %v247
    %v409 = vpop.f32.mrb[0].mxu0
    %v410 = vadd.f32 %v269, %v409
    %v411 = vpop.f32.mrb[0].mxu0
    %v412 = vpop.f32.mrb[0].mxu0
    %v413 = vadd.f32 %v269, %v412
    %v414 = vpop.f32.mrb[0].mxu0
    %415 = vdwg.mxu0
    %v416 = vmax.f32 %v354, 0.0
    %v417 = vmax.f32 %v357, 0.0
    %v418 = vmax.f32 %v362, 0.0
    %v419 = vmax.f32 %v365, 0.0
    %v420 = vmax.f32 %v370, 0.0
    %v421 = vmax.f32 %v373, 0.0
    %v422 = vmax.f32 %v378, 0.0
    %v423 = vmax.f32 %v381, 0.0
    %v424 = vmax.f32 %v386, 0.0
    %v425 = vmax.f32 %v389, 0.0
    %v426 = vmax.f32 %v394, 0.0
    %v427 = vmax.f32 %v397, 0.0
    %v428 = vmax.f32 %v402, 0.0
    %v429 = vmax.f32 %v405, 0.0
    %v430 = vmax.f32 %v410, 0.0
    %v431 = vmax.f32 %v413, 0.0
    %v432 = vld [vmem:[%s5] sm:$0xf]
    %v433 = vpack.c.bf16 %v417, %v416
    %v434 = vpack.c.bf16 %v419, %v418
    %v435 = vpack.c.bf16 %v421, %v420
    %v436 = vpack.c.bf16 %v423, %v422
    %v437 = vpack.c.bf16 %v425, %v424
    %v438 = vpack.c.bf16 %v427, %v426
    %v439 = vpack.c.bf16 %v429, %v428
    %v440 = vpack.c.bf16 %v431, %v430
    %v441 = vld [vmem:[%s6] sm:$0xff]
    %443 = vset.pattern.permute.xlu0 0
    %444 = vperm.xlu0 %443, %v441
    %v445 = vpop.permute.xlu0 %444
    %447 = vmatprep.subr.bf16.mxu0 0
    %448 = vmatpush1.bf16.xpose.msra.mxu0 %v433
    %449 = vmatprep.subr.bf16.mxu0 0
    %450 = vmatpush1.bf16.xpose.msra.mxu0 %v434
    %451 = vmatprep.subr.bf16.mxu0 0
    %452 = vmatpush1.bf16.xpose.msra.mxu0 %v435
    %453 = vmatprep.subr.bf16.mxu0 0
    %454 = vmatpush1.bf16.xpose.msra.mxu0 %v436
    %455 = vmatprep.subr.bf16.mxu0 0
    %456 = vmatpush1.bf16.xpose.msra.mxu0 %v437
    %457 = vmatprep.subr.bf16.mxu0 0
    %458 = vmatpush1.bf16.xpose.msra.mxu0 %v438
    %459 = vmatprep.subr.bf16.mxu0 0
    %460 = vmatpush1.bf16.xpose.msra.mxu0 %v439
    %461 = vmatprep.subr.bf16.mxu0 0
    %462 = vmatpush1.bf16.xpose.msra.mxu0 %v440
    %463 = vmatprep.subr.bf16.mxu0 0
    %464 = vmatpush1.bf16.xpose.msra.mxu0 0
    %465 = vmatprep.subr.bf16.mxu0 0
    %466 = vmatpush1.bf16.xpose.msra.mxu0 0
    %467 = vmatprep.subr.bf16.mxu0 0
    %468 = vmatpush1.bf16.xpose.msra.mxu0 0
    %469 = vmatprep.subr.bf16.mxu0 0
    %470 = vmatpush1.bf16.xpose.msra.mxu0 0
    %471 = vmatprep.subr.bf16.mxu0 0
    %472 = vmatpush1.bf16.xpose.msra.mxu0 0
    %473 = vmatprep.subr.bf16.mxu0 0
    %474 = vmatpush1.bf16.xpose.msra.mxu0 0
    %475 = vmatprep.subr.bf16.mxu0 0
    %476 = vmatpush1.bf16.xpose.msra.mxu0 0
    %477 = vmatprep.subr.bf16.mxu0 0
    %478 = vmatpush1.bf16.xpose.msra.mxu0 0
    %479 = vmatprep.mubr.bf16.mxu0 0
    %480 = vmatmul.mubr.bf16.gmra.mrb[0].mxu0 %v432
    %v481 = vpop.f32.mrb[0].mxu0
    %v482 = vadd.f32 %v445, %v481
    %v483 = vpop.f32.mrb[0].mxu0
    %v484 = vpop.f32.mrb[0].mxu0
    %v485 = vpop.f32.mrb[0].mxu0
    %486 = vdwg.mxu0
    %v487 = vlaneseq
    %v488 = vshrl.u32 %v487, 7
    %vm489 = vcmp.eq.s32.totalorder %v488, 0
    %v490 = vtanh.pop %v482
    %v491 = vmax.f32 %v482, 0.0
    %vm492 = vcmp.ne.f32.partialorder %v482, %v482
    %v493 = vadd.f32 %v482, 0.0
    %v494 = vand.u32 2147483647, %v482
    %v495 = vsub.f32 0.0, %v494
    %v496 = vmul.f32 %v495, 1.442695
    %v497 = vpow.pop %v496
    %v498 = vadd.f32 %v497, 1.0
    %v499 = vlog2.pop %v498
    %v500 = vmul.f32 %v499, 0.6931472
    %v501 = vmul.f32 -0.5, %v497
    %v502 = vadd.f32 %v501, 1.0
    %v503 = vmul.f32 %v502, %v497
    %v504 = vand.u32 2147483647, %v497
    %vm505 = vcmp.lt.f32.partialorder %v504, 0.0004427343
    %v506 = vsel %vm505, %v503, %v500
    %v507 = vadd.f32 %v491, %v506
    %v508 = vsel %vm492, %v493, %v507
    %v509 = vsel %vm489, %v490, %v508
    %510 = vst [vmem:[#allocation2] sm:$0xff] %v509
    // Predicated region
    $region30: #{tpu_custom_call.1} parent=1 // pred_check
      _
    $region31: #{tpu_custom_call.1} parent=1 // pred_check_branch
      %512 = sbr.rel (0) target = $region33
    $region32: #{tpu_custom_call.1} parent=1 // pred_region
      %s514 = ssub.s32 128, 128
      %515 = vsyncadd [#allocation3], %s514
      %s517 = sshll.u32 [#allocation2], 4
      %s518 = int_to_ptr.vmem [resolvable:$true] %s517
      %520 = dma.vmem_to_hbm [thread:$0]  %s518, 128, %s7, [#allocation3]
    $region33: #{tpu_custom_call.1} parent=1 // pred_fallthru
      _
    // Predicated region
    $region34: #{tpu_custom_call.1} parent=1 // pred_check
      _
    $region35: #{tpu_custom_call.1} parent=1 // pred_check_branch
      %522 = sbr.rel (0) target = $region37
    $region36: #{tpu_custom_call.1} parent=1 // pred_region
      %523 = dma.done [#allocation3], 128
    $region37: #{tpu_custom_call.1} parent=1 // pred_fallthru
      _
    %524 = vsyncpa [#allocation3], 1

</llo_original>
